<compile_context>
chip_gen: v7x
topology: tpu7x:2x2x1
jax: 0.10.0
libtpu: 0.0.40
codegen_flags: <defaults>
</compile_context>

<pallas_src>
import functools

import jax
import jax.numpy as jnp
from jax.experimental import pallas as pl
from jax.experimental.pallas import tpu as pltpu

_MiB = 1024 * 1024


def _round_up(x: int, m: int) -> int:
    return ((x + m - 1) // m) * m


def _sublane(dtype) -> int:
    itemsize = jax.dtypes.canonicalize_dtype(dtype).itemsize
    return {4: 8, 2: 16, 1: 32}[itemsize]


@functools.lru_cache(maxsize=None)
def _hw_defaults():
    """Tile caps / VMEM limit keyed off the actual chip (v7x has 64 MiB VMEM)."""
    vmem_cap = 64 * _MiB  # conservative fallback (v7x-sized)
    try:
        info = pltpu.get_tpu_info()
        vmem_cap = int(getattr(info, "vmem_capacity_bytes", vmem_cap))
    except Exception:
        pass
    if vmem_cap >= 100 * _MiB:  # v5e / v6e: 128 MiB VMEM
        return dict(tm_cap=1024, tn_cap=2048, tk_cap=512, vmem_limit=96 * _MiB)
    # v7x: 64 MiB VMEM per TensorCore -> same bf16 tile set, smaller limit.
    return dict(tm_cap=1024, tn_cap=2048, tk_cap=512, vmem_limit=56 * _MiB)


def _pick_tile(padded_dim: int, multiple: int, cap: int, floor: int) -> int:
    """Pick a tile (multiple of `multiple`, <= cap, >= floor) minimizing the
    padded extent round_up(padded_dim, tile); prefers the largest such tile."""
    if padded_dim <= cap:
        return padded_dim
    best_t, best_p = cap, _round_up(padded_dim, cap)
    c = cap // multiple
    while c * multiple >= floor:
        t = c * multiple
        p = _round_up(padded_dim, t)
        if p < best_p:
            best_t, best_p = t, p
        c -= 1
    return best_t


def _nk_plan(v_size: int, emb_dim: int, tn=None, tk=None):
    """(tn, tk, Np, Kp) — shared by prepare_weight() and output_layer()."""
    hw = _hw_defaults()
    np128 = _round_up(v_size, 128)
    kp128 = _round_up(emb_dim, 128)
    if tn is None:
        tn = _pick_tile(np128, 128, hw["tn_cap"], floor=512)
    if tn % 128 != 0:
        raise ValueError(f"tn={tn} must be a multiple of 128")
    if tk is None:
        tk = _pick_tile(kp128, 128, hw["tk_cap"], floor=128)
    if tk % 128 != 0:
        raise ValueError(f"tk={tk} must be a multiple of 128")
    return tn, tk, _round_up(np128, tn), _round_up(kp128, tk)


def prepare_weight(weight, *, compute_dtype=jnp.bfloat16, tn=None, tk=None):
    """One-time weight preparation: cast to compute_dtype and pad the PyTorch
    (v_size, emb_dim) weight to the kernel's (Np, Kp) layout.

    Call this ONCE per weight and reuse the result across output_layer calls
    (pass v_size= explicitly there); it removes the per-call O(|W|) HBM copy
    that casting/padding a multi-GiB LM-head weight would otherwise cost."""
    v_size, emb_dim = weight.shape
    tn, tk, np_, kp_ = _nk_plan(v_size, emb_dim, tn, tk)
    w = weight
    if compute_dtype is not None:
        cdt = jax.dtypes.canonicalize_dtype(compute_dtype)
        if w.dtype != cdt:
            w = w.astype(cdt)
    if (np_, kp_) != (v_size, emb_dim):
        w = jnp.pad(w, ((0, np_ - v_size), (0, kp_ - emb_dim)))
    return w


# --------------------------------------------------------------------------
# Kernels
# --------------------------------------------------------------------------
def _linear_kernel_f32(z_ref, w_ref, o_ref):
    """f32 output: accumulate directly into the resident output block."""
    @pl.when(pl.program_id(2) == 0)
    def _():
        o_ref[...] = jnp.zeros_like(o_ref)

    # z_ref: (tm, tk), w_ref: (tn, tk) -> contract the trailing (K) dims.
    o_ref[...] += jax.lax.dot_general(
        z_ref[...],
        w_ref[...],
        dimension_numbers=(((1,), (1,)), ((), ())),
        preferred_element_type=jnp.float32,
    )


def _linear_kernel_acc(z_ref, w_ref, o_ref, acc_ref):
    """Non-f32 output: f32 scratch accumulator, cast on the last K step."""
    @pl.when(pl.program_id(2) == 0)
    def _():
        acc_ref[...] = jnp.zeros_like(acc_ref)

    acc_ref[...] += jax.lax.dot_general(
        z_ref[...],
        w_ref[...],
        dimension_numbers=(((1,), (1,)), ((), ())),
        preferred_element_type=jnp.float32,
    )

    @pl.when(pl.program_id(2) == pl.num_programs(2) - 1)
    def _():
        o_ref[...] = acc_ref[...].astype(o_ref.dtype)


# --------------------------------------------------------------------------
# Wrapper
# --------------------------------------------------------------------------
@functools.partial(
    jax.jit,
    static_argnames=("v_size", "tm", "tn", "tk", "compute_dtype", "weight_buffers"),
)
def output_layer(z, weight, *, v_size=None, tm=None, tn=None, tk=None,
                 compute_dtype=jnp.bfloat16, weight_buffers=None):
    """out = z @ weight.T  (nn.Linear(emb_dim, v_size, bias=False)).

    `weight` may be the raw PyTorch-layout (v_size, emb_dim) weight, or the
    result of prepare_weight() (then pass v_size= explicitly)."""
    orig_shape = z.shape
    emb_dim = orig_shape[-1]
    out_dtype = z.dtype

    hw = _hw_defaults()
    cdt = jax.dtypes.canonicalize_dtype(
        compute_dtype if compute_dtype is not None else z.dtype)

    if v_size is None:
        # Raw weight; for a prepared (padded) weight pass v_size explicitly.
        v_size = weight.shape[0]

    tn, tk, np_, kp_ = _nk_plan(v_size, emb_dim, tn, tk)

    # ---- weight: fast path (already prepared) vs. per-call prep ----
    if weight.shape == (np_, kp_) and weight.dtype == cdt:
        w = weight                              # no HBM copy of the weight
    elif weight.shape == (v_size, emb_dim):
        # Slow path: per-call cast+pad of the full weight (O(|W|) HBM copy).
        # Prefer prepare_weight(...) once outside the per-step path.
        w = prepare_weight(weight, compute_dtype=cdt, tn=tn, tk=tk)
    else:
        raise ValueError(
            f"weight shape {weight.shape}/dtype {weight.dtype} matches neither the "
            f"raw layout {(v_size, emb_dim)} nor the prepared layout "
            f"{(np_, kp_)} with dtype {cdt}")

    # ---- activations ----
    z2d = z.reshape(-1, emb_dim)
    M = z2d.shape[0]
    if z2d.dtype != cdt:
        z2d = z2d.astype(cdt)

    sub = max(_sublane(cdt), _sublane(out_dtype))
    if tm is None:
        m_sub = _round_up(M, sub)
        # Each M-tile costs a full pass over the weight -> keep tm large, but
        # minimize padded rows (e.g. M=2032 -> tm=1016 instead of 1024+pad).
        tm = _pick_tile(m_sub, sub, hw["tm_cap"], floor=hw["tm_cap"] // 2)
    if tm % sub != 0:
        raise ValueError(f"tm={tm} must be a multiple of {sub} for dtype {cdt}")
    mp = _round_up(M, tm)

    if (mp, kp_) != (M, emb_dim):
        # zero K-padding is exact; extra M rows are sliced off below.
        z2d = jnp.pad(z2d, ((0, mp - M), (0, kp_ - emb_dim)))

    grid_m, grid_n, grid_k = mp // tm, np_ // tn, kp_ // tk

    # ---- kernel / scratch selection ----
    if out_dtype == jnp.float32:
        kernel, scratch_shapes = _linear_kernel_f32, []
    else:
        kernel = _linear_kernel_acc
        scratch_shapes = [pltpu.VMEM((tm, tn), jnp.float32)]

    # ---- weight stream buffering (decode is weight-bandwidth bound) ----
    if weight_buffers is None:
        weight_buffers = 3 if (grid_m == 1 and grid_n * grid_k >= 3) else 2
    w_index_map = lambda i, j, k: (j, k)
    if weight_buffers != 2:
        try:
            w_spec = pl.BlockSpec((tn, tk), w_index_map,
                                  pipeline_mode=pl.Buffered(weight_buffers))
        except Exception:
            w_spec = pl.BlockSpec((tn, tk), w_index_map)
    else:
        w_spec = pl.BlockSpec((tn, tk), w_index_map)

    out2d = pl.pallas_call(
        kernel,
        out_shape=jax.ShapeDtypeStruct((mp, np_), out_dtype),
        grid_spec=pltpu.PrefetchScalarGridSpec(
            num_scalar_prefetch=0,
            grid=(grid_m, grid_n, grid_k),
            in_specs=[
                pl.BlockSpec((tm, tk), lambda i, j, k: (i, k)),
                w_spec,                          # native (v_size, emb_dim) layout
            ],
            out_specs=pl.BlockSpec((tm, tn), lambda i, j, k: (i, j)),
            scratch_shapes=scratch_shapes,
        ),
        compiler_params=pltpu.CompilerParams(
            dimension_semantics=("parallel", "parallel", "arbitrary"),
            vmem_limit_bytes=hw["vmem_limit"],
        ),
    )(z2d, w)

    if (mp, np_) != (M, v_size):
        out2d = out2d[:M, :v_size]
    return out2d.reshape(*orig_shape[:-1], v_size)


if __name__ == "__main__":
    # Small shapes consistent with the module's forward: z (batch, seq, emb_dim).
    batch, seq, emb_dim, v_size = 2, 8, 32, 64

    key = jax.random.PRNGKey(0)
    kz, kw = jax.random.split(key)

    z = jax.random.normal(kz, (batch, seq, emb_dim), dtype=jnp.float32)
    # Same shape/init range as nn.Linear(emb_dim, v_size).weight (bias=False).
    bound = 1.0 / (emb_dim ** 0.5)
    weight = jax.random.uniform(
        kw, (v_size, emb_dim), minval=-bound, maxval=bound, dtype=jnp.float32
    )

    ref = z @ weight.T

    # Production path: bf16 compute (f32 accumulate) with a pre-prepared weight
    # (one-time cast/pad, reused across calls -> no per-call weight copy).
    w_prep = prepare_weight(weight)                    # call ONCE and cache
    out = output_layer(z, w_prep, v_size=v_size)
    jax.block_until_ready(out)
    assert out.shape == (batch, seq, v_size)
    assert out.dtype == z.dtype
    assert jnp.allclose(out, ref, atol=3e-2, rtol=3e-2), "bf16-compute mismatch"

    # Full-precision path (raw weight, f32 compute) — exact check.
    out_f32 = output_layer(z, weight, compute_dtype=jnp.float32)
    jax.block_until_ready(out_f32)
    assert jnp.allclose(out_f32, ref, atol=1e-5, rtol=1e-5), "f32 mismatch"

    print("KERNEL_OK")
</pallas_src>

<mosaic_0001>
module attributes {stable_mosaic.version = 11 : i64} {
  func.func @_linear_kernel_f32(%arg0: i32, %arg1: i32, %arg2: i32, %arg3: memref<16x128xbf16, #tpu.memory_space<vmem>>, %arg4: memref<128x128xbf16, #tpu.memory_space<vmem>>, %arg5: memref<16x128xf32, #tpu.memory_space<vmem>>) attributes {dimension_semantics = [#tpu.dimension_semantics<parallel>, #tpu.dimension_semantics<parallel>, #tpu.dimension_semantics<arbitrary>], iteration_bounds = array<i64: 1, 1, 1>, scalar_prefetch = 0 : i64, scratch_operands = 0 : i64, tpu.core_type = #tpu.core_type<tc>, window_params = [{transform_indices = @transform_0, window_bounds = array<i64: 16, 128>}, {transform_indices = @transform_1, window_bounds = array<i64: 128, 128>}, {transform_indices = @transform_2, window_bounds = array<i64: 16, 128>}]} {
    %c0_i32 = arith.constant 0 : i32
    %0 = arith.cmpi eq, %arg2, %c0_i32 : i32
    %1 = arith.extui %0 : i1 to i32
    %c0_i32_0 = arith.constant 0 : i32
    %2 = arith.cmpi ne, %1, %c0_i32_0 : i32
    scf.if %2 {
      %cst_8 = arith.constant 0.000000e+00 : f32
      %9 = vector.broadcast %cst_8 : f32 to vector<16x128xf32>
      %c0_9 = arith.constant 0 : index
      %c0_10 = arith.constant 0 : index
      %10 = vector.load %arg5[%c0_9, %c0_10] : memref<16x128xf32, #tpu.memory_space<vmem>>, vector<16x128xf32>
      tpu.vector_store %arg5[%c0_9, %c0_10], %9 {strides = array<i32>} : memref<16x128xf32, #tpu.memory_space<vmem>>, vector<16x128xf32>,
    } else {
    }
    %c0 = arith.constant 0 : index
    %c0_1 = arith.constant 0 : index
    %3 = vector.load %arg5[%c0, %c0_1] : memref<16x128xf32, #tpu.memory_space<vmem>>, vector<16x128xf32>
    %c0_2 = arith.constant 0 : index
    %c0_3 = arith.constant 0 : index
    %4 = vector.load %arg3[%c0_2, %c0_3] : memref<16x128xbf16, #tpu.memory_space<vmem>>, vector<16x128xbf16>
    %c0_4 = arith.constant 0 : index
    %c0_5 = arith.constant 0 : index
    %5 = vector.load %arg4[%c0_4, %c0_5] : memref<128x128xbf16, #tpu.memory_space<vmem>>, vector<128x128xbf16>
    %cst = arith.constant dense<0.000000e+00> : vector<16x128xf32>
    %6 = tpu.matmul %4, %5, %cst {dimension_numbers = #tpu.dot_dimension_numbers<[1], [1], [0], [0], [0, 0, 1, 0], [], []>} : vector<16x128xbf16>, vector<128x128xbf16>, vector<16x128xf32> -> vector<16x128xf32>
    %7 = arith.addf %3, %6 : vector<16x128xf32>
    %c0_6 = arith.constant 0 : index
    %c0_7 = arith.constant 0 : index
    %8 = vector.load %arg5[%c0_6, %c0_7] : memref<16x128xf32, #tpu.memory_space<vmem>>, vector<16x128xf32>
    tpu.vector_store %arg5[%c0_6, %c0_7], %7 {strides = array<i32>} : memref<16x128xf32, #tpu.memory_space<vmem>>, vector<16x128xf32>,
    return
  }
  func.func @transform_0(%arg0: i32, %arg1: i32, %arg2: i32) -> (i32, i32) {
    %c0_i32 = arith.constant 0 : i32
    return %arg0, %arg2 : i32, i32
  }
  func.func @transform_1(%arg0: i32, %arg1: i32, %arg2: i32) -> (i32, i32) {
    %c0_i32 = arith.constant 0 : i32
    return %arg1, %arg2 : i32, i32
  }
  func.func @transform_2(%arg0: i32, %arg1: i32, %arg2: i32) -> (i32, i32) {
    %c0_i32 = arith.constant 0 : i32
    return %arg0, %arg1 : i32, i32
  }
}

</mosaic_0001>

<llo_original>
// kernel: output_layer.1
$region0: #{output_layer.1}
  #allocation0 [shape = 'u32[]', space=smem, size = 0x4, offset = 0x4, fixed_abs, tag = 'smem constant byte address 0x4 - core index']
  #allocation1 [shape = 'u32[144,128]{1,0:T(1,128)}', space=vmem, size = 0x12000, scoped, tag = 'internal scratch']
  %s0 = inlined_call_operand.vmem [shape: bf16[16,128], index: 0, kind: input, shape index: {}]
  %s1 = inlined_call_operand.hbm [shape: bf16[128,128], index: 1, kind: input, shape index: {}]
  %s2 = inlined_call_operand.vmem [shape: f32[16,128], index: 2, kind: output, shape index: {}]
  %s3 = sld [smem:[#allocation0]]
  $region26: #{output_layer.1} parent=0
    _
  %s5 = ssub.s32 1, %s3
  %s6 = scalar_select 0, %s5, %s3
  $region1: #{output_layer.1} parent=0
    #allocation2 [shape = 'u8[32768]{0}', space=vmem, size = 0x8000, scoped, tag = 'input window, operand 1, single buffered']
    #allocation3 [shape = 's32[1]{0}', space=sflag, size = 0x4, scoped, tag = 'scoped memory for output_layer.1']
    %7 = vsyncpa [#allocation3], 0
    // Predicated region
    $region2: #{output_layer.1} parent=1 // pred_check
      _
    $region3: #{output_layer.1} parent=1 // pred_check_branch
      %9 = sbr.rel (0) target = $region5
    $region4: #{output_layer.1} parent=1 // pred_region
      _
    $region5: #{output_layer.1} parent=1 // pred_fallthru
      _
    // Predicated region
    $region6: #{output_layer.1} parent=1 // pred_check
      _
    $region7: #{output_layer.1} parent=1 // pred_check_branch
      %11 = sbr.rel (0) target = $region9
    $region8: #{output_layer.1} parent=1 // pred_region
      %s13 = ssub.s32 1024, 1024
      %14 = vsyncadd [#allocation3], %s13
      %s15 = sshll.u32 [#allocation2], 4
      %s16 = int_to_ptr.vmem [resolvable:$true] %s15
      %21 = dma.hbm_to_vmem [thread:$0]  %s1, 1024, %s16, [#allocation3], 64, 64, 4
    $region9: #{output_layer.1} parent=1 // pred_fallthru
      _
    // Predicated region
    $region10: #{output_layer.1} parent=1 // pred_check
      _
    $region11: #{output_layer.1} parent=1 // pred_check_branch
      %23 = sbr.rel (0) target = $region13
    $region12: #{output_layer.1} parent=1 // pred_region
      %24 = dma.done [#allocation3], 1024
    $region13: #{output_layer.1} parent=1 // pred_fallthru
      _
    %p26 = scmp.eq.s32.totalorder 0, 0
    // Predicated region
    $region14: #{output_layer.1} parent=1 // pred_check
      %p27 = pneg %p26
    $region15: #{output_layer.1} parent=1 // pred_check_branch
      %29 = sbr.rel (%p27) target = $region17
    $region16: #{output_layer.1} parent=1 // pred_region
      %30 = vst [vmem:[%s2] sm:$0xff] 0.0
      %31 = vst [vmem:[%s2 + $0x8] sm:$0xff] 0.0
    $region17: #{output_layer.1} parent=1 // pred_fallthru
      _
    %v32 = vld [vmem:[%s2] sm:$0xff]
    %v33 = vld [vmem:[%s2 + $0x8] sm:$0xff]
    %v34 = vld [vmem:[%s0] sm:$0xf]
    %v35 = vld [vmem:[%s0 + $0x4] sm:$0xf]
    %v36 = vld [vmem:[#allocation2] sm:$0xf]
    %v37 = vld [vmem:[#allocation2 + $0x4] sm:$0xf]
    %v38 = vld [vmem:[#allocation2 + $0x8] sm:$0xf]
    %v39 = vld [vmem:[#allocation2 + $0xc] sm:$0xf]
    %v40 = vld [vmem:[#allocation2 + $0x10] sm:$0xf]
    %v41 = vld [vmem:[#allocation2 + $0x14] sm:$0xf]
    %v42 = vld [vmem:[#allocation2 + $0x18] sm:$0xf]
    %v43 = vld [vmem:[#allocation2 + $0x1c] sm:$0xf]
    %v44 = vld [vmem:[#allocation2 + $0x20] sm:$0xf]
    %v45 = vld [vmem:[#allocation2 + $0x24] sm:$0xf]
    %v46 = vld [vmem:[#allocation2 + $0x28] sm:$0xf]
    %v47 = vld [vmem:[#allocation2 + $0x2c] sm:$0xf]
    %v48 = vld [vmem:[#allocation2 + $0x30] sm:$0xf]
    %v49 = vld [vmem:[#allocation2 + $0x34] sm:$0xf]
    %v50 = vld [vmem:[#allocation2 + $0x38] sm:$0xf]
    %v51 = vld [vmem:[#allocation2 + $0x3c] sm:$0xf]
    %v54 = vunpack.c.l.b16 %v34
    %v55 = vunpack.c.l.b16 %v35
    %v56 = vpack.c.b16 %v55, %v54
    %v74 = vunpack.c.l.b16 %v36
    %v75 = vunpack.c.l.b16 %v37
    %v76 = vunpack.c.l.b16 %v38
    %v77 = vunpack.c.l.b16 %v39
    %v78 = vunpack.c.l.b16 %v40
    %v79 = vunpack.c.l.b16 %v41
    %v80 = vunpack.c.l.b16 %v42
    %v81 = vunpack.c.l.b16 %v43
    %v82 = vunpack.c.l.b16 %v44
    %v83 = vunpack.c.l.b16 %v45
    %v84 = vunpack.c.l.b16 %v46
    %v85 = vunpack.c.l.b16 %v47
    %v86 = vunpack.c.l.b16 %v48
    %v87 = vunpack.c.l.b16 %v49
    %v88 = vunpack.c.l.b16 %v50
    %v89 = vunpack.c.l.b16 %v51
    %v90 = vpack.c.b16 %v75, %v74
    %v91 = vpack.c.b16 %v77, %v76
    %v92 = vpack.c.b16 %v79, %v78
    %v93 = vpack.c.b16 %v81, %v80
    %v94 = vpack.c.b16 %v83, %v82
    %v95 = vpack.c.b16 %v85, %v84
    %v96 = vpack.c.b16 %v87, %v86
    %v97 = vpack.c.b16 %v89, %v88
    %106 = vmatprep.subr.bf16.mxu0 0
    %107 = vmatpush1.bf16.xpose.msra.mxu0 %v90
    %108 = vmatprep.subr.bf16.mxu0 0
    %109 = vmatpush1.bf16.xpose.msra.mxu0 %v91
    %110 = vmatprep.subr.bf16.mxu0 0
    %111 = vmatpush1.bf16.xpose.msra.mxu0 %v92
    %112 = vmatprep.subr.bf16.mxu0 0
    %113 = vmatpush1.bf16.xpose.msra.mxu0 %v93
    %114 = vmatprep.subr.bf16.mxu0 0
    %115 = vmatpush1.bf16.xpose.msra.mxu0 %v94
    %116 = vmatprep.subr.bf16.mxu0 0
    %117 = vmatpush1.bf16.xpose.msra.mxu0 %v95
    %118 = vmatprep.subr.bf16.mxu0 0
    %119 = vmatpush1.bf16.xpose.msra.mxu0 %v96
    %120 = vmatprep.subr.bf16.mxu0 0
    %121 = vmatpush1.bf16.xpose.msra.mxu0 %v97
    %122 = vmatprep.subr.bf16.mxu0 0
    %123 = vmatpush1.bf16.xpose.msra.mxu0 0
    %124 = vmatprep.subr.bf16.mxu0 0
    %125 = vmatpush1.bf16.xpose.msra.mxu0 0
    %126 = vmatprep.subr.bf16.mxu0 0
    %127 = vmatpush1.bf16.xpose.msra.mxu0 0
    %128 = vmatprep.subr.bf16.mxu0 0
    %129 = vmatpush1.bf16.xpose.msra.mxu0 0
    %130 = vmatprep.subr.bf16.mxu0 0
    %131 = vmatpush1.bf16.xpose.msra.mxu0 0
    %132 = vmatprep.subr.bf16.mxu0 0
    %133 = vmatpush1.bf16.xpose.msra.mxu0 0
    %134 = vmatprep.subr.bf16.mxu0 0
    %135 = vmatpush1.bf16.xpose.msra.mxu0 0
    %136 = vmatprep.subr.bf16.mxu0 0
    %137 = vmatpush1.bf16.xpose.msra.mxu0 0
    %138 = vmatprep.mubr.bf16.mxu0 0
    %139 = vmatmul.mubr.bf16.gmra.mrb[0].mxu0 %v56
    %v140 = vpop.f32.mrb[0].mxu0
    %v141 = vadd.f32 0.0, %v140
    %v142 = vpop.f32.mrb[0].mxu0
    %v143 = vpop.f32.mrb[0].mxu0
    %v144 = vadd.f32 0.0, %v143
    %v145 = vpop.f32.mrb[0].mxu0
    %146 = vdwg.mxu0
    %v147 = vadd.f32 %v32, %v141
    %v148 = vadd.f32 %v33, %v144
    %149 = vst [vmem:[%s2] sm:$0xff] %v147
    %150 = vst [vmem:[%s2 + $0x8] sm:$0xff] %v148
    // Predicated region
    $region18: #{output_layer.1} parent=1 // pred_check
      _
    $region19: #{output_layer.1} parent=1 // pred_check_branch
      %152 = sbr.rel (0) target = $region21
    $region20: #{output_layer.1} parent=1 // pred_region
      _
    $region21: #{output_layer.1} parent=1 // pred_fallthru
      _
    // Predicated region
    $region22: #{output_layer.1} parent=1 // pred_check
      _
    $region23: #{output_layer.1} parent=1 // pred_check_branch
      %154 = sbr.rel (0) target = $region25
    $region24: #{output_layer.1} parent=1 // pred_region
      _
    $region25: #{output_layer.1} parent=1 // pred_fallthru
      _
    %155 = vsyncpa [#allocation3], 1

</llo_original>
